<compile_context>
chip_gen: v6e
topology: v6e:2x2x1
jax: 0.10.0
libtpu: 0.0.40
codegen_flags: <defaults>
</compile_context>

<pallas_src>
import jax
import jax.numpy as jnp
from jax.experimental import pallas as pl
from jax.experimental.pallas import tpu as pltpu

# ----------------------------- model hyper-params (small) -----------------------------
B = 2                                   # batch
IN_CH = 3                               # image channels
IMG = 16                                # spatial size (IMG x IMG)
PATCH = 4                               # patch size -> L = (IMG//PATCH)**2 tokens
L = (IMG // PATCH) ** 2                 # 16 tokens
PATCH_DIM = IN_CH * PATCH * PATCH       # 48 (unpadded contraction dim)
K_PAD = 64                              # K padded to a sublane/MXU-friendly multiple
D = 64                                  # embed dim ("n_features" analog)
CLASS_NUM = 131                         # as in the module default
C_PAD = 256                             # class axis padded to 2 x 128 lanes
CONTEXT_LENGTH = 50                     # text_head exists in __init__ but is unused in forward
EPS = 1e-5


# ----------------------------- fused kernel: embed + LN + head + pool -----------------
def fused_kernel(p_ref, we_ref, wh_ref, vec_ref, logits_ref, feats_ref):
    # p_ref:   (B*L, K_PAD)  bf16  padded patches (col 48 == 1.0 -> folded embed bias)
    # we_ref:  (K_PAD, D)    bf16  padded patch-embedding weight (row 48 == b_embed)
    # wh_ref:  (D, C_PAD)    bf16  padded classifier weight
    # vec_ref: (3, C_PAD)    f32   packed small vectors: [gamma | beta | b_head]
    # logits_ref: (B, C_PAD) f32   padded logits (lane-dense, 256 = 2x128)
    # feats_ref:  (B*L, D)   f32   hook features ("image feature")
    gamma = vec_ref[0:1, 0:D]            # (1, D)
    beta = vec_ref[1:2, 0:D]             # (1, D)
    b_head = vec_ref[2:3, :]             # (1, C_PAD)

    # backbone "layers": patch-embedding projection, bias folded into the K padding.
    # Single MXU matmul, M = B*L = 32, bf16 operands, f32 accumulation.
    feats = jnp.dot(p_ref[...], we_ref[...], preferred_element_type=jnp.float32)  # (B*L, D)
    feats_ref[...] = feats                # hook output, stays in VMEM for the head below

    # LayerNorm over D (biased variance, eps inside rsqrt) — f32 VPU math (v5e-safe).
    mu = jnp.mean(feats, axis=-1, keepdims=True)
    var = jnp.mean((feats - mu) * (feats - mu), axis=-1, keepdims=True)
    normed = (feats - mu) * jax.lax.rsqrt(var + EPS) * gamma + beta               # (B*L, D)

    # Head first (M = 32 instead of 2), then average-pool the L token rows per batch
    # element (static 8-aligned sublane slices since L = 16; no in-kernel reshape).
    logits_tok = jnp.dot(
        normed.astype(jnp.bfloat16), wh_ref[...], preferred_element_type=jnp.float32
    )                                     # (B*L, C_PAD)
    pooled = jnp.concatenate(
        [
            jnp.mean(logits_tok[b * L:(b + 1) * L, :], axis=0, keepdims=True)
            for b in range(B)
        ],
        axis=0,
    )                                     # (B, C_PAD)
    logits_ref[...] = pooled + b_head


def fused_forward(patches_bf16, w_embed_bf16, w_head_bf16, vec_f32):
    flops = (
        2 * (B * L) * K_PAD * D           # patch embedding
        + 2 * (B * L) * D * C_PAD         # classifier head (per-token, pre-pool)
        + 10 * (B * L) * D                # layernorm + pooling (approx)
    )
    bytes_accessed = (
        2 * (patches_bf16.size + w_embed_bf16.size + w_head_bf16.size)   # bf16 inputs
        + 4 * vec_f32.size
        + 4 * (B * C_PAD + B * L * D)                                     # f32 outputs
    )
    vmem_spec = pl.BlockSpec(memory_space=pltpu.MemorySpace.VMEM)
    return pl.pallas_call(
        fused_kernel,
        out_shape=(
            jax.ShapeDtypeStruct((B, C_PAD), jnp.float32),     # padded logits
            jax.ShapeDtypeStruct((B * L, D), jnp.float32),     # hook features
        ),
        # No grid: single invocation, whole (tiny) arrays resident in VMEM.
        in_specs=[vmem_spec, vmem_spec, vmem_spec, vmem_spec],
        out_specs=(vmem_spec, vmem_spec),
        compiler_params=pltpu.CompilerParams(
            # let XLA fuse the patchify producer (reshape/transpose/pad/cast) into the
            # pallas call instead of materialising the patch tensor in HBM.
            allow_input_fusion=[True, False, False, False],
        ),
        cost_estimate=pl.CostEstimate(
            flops=flops, transcendentals=B * L, bytes_accessed=bytes_accessed
        ),
    )(patches_bf16, w_embed_bf16, w_head_bf16, vec_f32)


# ----------------------------- glue: patchify + param packing + forward ---------------
def patchify_padded(x_nchw):
    # (B, C, H, W) -> (B*L, K_PAD) bf16: non-overlapping PxP patches, channel-first
    # within a patch (c, ph, pw), zero-padded 48 -> 64 on the contraction dim; column
    # 48 is set to 1.0 so the embed bias row folded into the weight is picked up.
    b, c, h, w = x_nchw.shape
    x = x_nchw.reshape(b, c, h // PATCH, PATCH, w // PATCH, PATCH)
    x = jnp.transpose(x, (0, 2, 4, 1, 3, 5))             # (B, Hp, Wp, C, P, P)
    patches = x.reshape(b * (h // PATCH) * (w // PATCH), c * PATCH * PATCH)
    patches = patches.astype(jnp.float32)
    patches = jnp.pad(patches, ((0, 0), (0, K_PAD - PATCH_DIM)))
    patches = patches.at[:, PATCH_DIM].set(1.0)           # bias column
    return patches.astype(jnp.bfloat16)


def pack_params(params):
    # One-time (weight-prep) padding / packing of the parameters for the fused kernel.
    w_embed_pad = jnp.zeros((K_PAD, D), jnp.float32)
    w_embed_pad = w_embed_pad.at[:PATCH_DIM, :].set(params["w_embed"])
    w_embed_pad = w_embed_pad.at[PATCH_DIM, :].set(params["b_embed"][0])   # folded bias
    w_head_pad = jnp.zeros((D, C_PAD), jnp.float32).at[:, :CLASS_NUM].set(params["w_head"])
    vec = jnp.zeros((3, C_PAD), jnp.float32)
    vec = vec.at[0, :D].set(params["gamma"][0])
    vec = vec.at[1, :D].set(params["beta"][0])
    vec = vec.at[2, :CLASS_NUM].set(params["b_head"][0])
    return {
        "w_embed_bf16": w_embed_pad.astype(jnp.bfloat16),
        "w_head_bf16": w_head_pad.astype(jnp.bfloat16),
        "vec": vec,
    }


@jax.jit
def triplet_model_forward(x_nchw, packed):
    patches = patchify_padded(x_nchw)     # fused into the pallas call (allow_input_fusion)
    logits_pad, feats_flat = fused_forward(
        patches, packed["w_embed_bf16"], packed["w_head_bf16"], packed["vec"]
    )
    logits = logits_pad[:, :CLASS_NUM]            # drop zero-padded class columns
    image_march = feats_flat.reshape(B, L * D)    # == hook output .view(x.size(0), -1)
    return logits, image_march


def init_params(key):
    ks = jax.random.split(key, 6)
    scale_e = 1.0 / jnp.sqrt(PATCH_DIM)
    scale_h = 1.0 / jnp.sqrt(D)
    return {
        "w_embed": jax.random.normal(ks[0], (PATCH_DIM, D), jnp.float32) * scale_e,
        "b_embed": jax.random.normal(ks[1], (1, D), jnp.float32) * 0.01,
        "gamma": jnp.ones((1, D), jnp.float32),
        "beta": jnp.zeros((1, D), jnp.float32),
        "w_head": jax.random.normal(ks[2], (D, CLASS_NUM), jnp.float32) * scale_h,
        "b_head": jax.random.normal(ks[3], (1, CLASS_NUM), jnp.float32) * 0.01,
        # text_head weights exist in the module but are never used in forward():
        "w_text": jax.random.normal(ks[4], (L * D, CONTEXT_LENGTH), jnp.float32) * 0.01,
        "b_text": jnp.zeros((1, CONTEXT_LENGTH), jnp.float32),
    }


# ----------------------------- references -------------------------------------------
def matched_reference(x_nchw, packed):
    # Mirrors the kernel's exact arithmetic (bf16 matmul operands, f32 accumulation,
    # f32 LN, matmul-then-pool, folded embed bias).
    patches = patchify_padded(x_nchw)
    feats = jnp.dot(patches, packed["w_embed_bf16"], preferred_element_type=jnp.float32)
    mu = feats.mean(-1, keepdims=True)
    var = ((feats - mu) ** 2).mean(-1, keepdims=True)
    gamma = packed["vec"][0:1, :D]
    beta = packed["vec"][1:2, :D]
    normed = (feats - mu) * jax.lax.rsqrt(var + EPS) * gamma + beta
    logits_tok = jnp.dot(
        normed.astype(jnp.bfloat16), packed["w_head_bf16"], preferred_element_type=jnp.float32
    )
    logits = logits_tok.reshape(B, L, C_PAD).mean(axis=1) + packed["vec"][2:3, :]
    return logits[:, :CLASS_NUM], feats.reshape(B, L * D)


def reference_forward(x_nchw, params):
    # Pure-JAX f32 reference on the UNPADDED parameters (module semantics).
    b, c, h, w = x_nchw.shape
    x = x_nchw.reshape(b, c, h // PATCH, PATCH, w // PATCH, PATCH)
    x = jnp.transpose(x, (0, 2, 4, 1, 3, 5))
    patches = x.reshape(b * L, PATCH_DIM).astype(jnp.float32)
    feats = patches @ params["w_embed"] + params["b_embed"]
    feats3 = feats.reshape(b, L, D)
    mu = feats3.mean(-1, keepdims=True)
    var = ((feats3 - mu) ** 2).mean(-1, keepdims=True)
    normed = (feats3 - mu) / jnp.sqrt(var + EPS) * params["gamma"] + params["beta"]
    pooled = normed.mean(axis=1)
    logits = pooled @ params["w_head"] + params["b_head"]
    return logits, feats3.reshape(b, L * D)


if __name__ == "__main__":
    key = jax.random.PRNGKey(0)
    k_x, k_p = jax.random.split(key)
    x = jax.random.normal(k_x, (B, IN_CH, IMG, IMG), jnp.float32)
    params = init_params(k_p)
    packed = pack_params(params)

    logits, image_march = triplet_model_forward(x, packed)
    jax.block_until_ready((logits, image_march))

    m_logits, m_march = matched_reference(x, packed)      # same precision as the kernel
    f_logits, f_march = reference_forward(x, params)      # full-f32 module semantics

    assert logits.shape == (B, CLASS_NUM) and image_march.shape == (B, L * D)
    # tight check against the matched-precision reference
    assert jnp.allclose(logits, m_logits, atol=2e-3, rtol=2e-3)
    assert jnp.allclose(image_march, m_march, atol=2e-3, rtol=2e-3)
    # loose check against the f32 reference (bf16 matmul operands => small drift)
    assert jnp.allclose(logits, f_logits, atol=5e-2, rtol=5e-2)
    assert jnp.allclose(image_march, f_march, atol=5e-2, rtol=5e-2)
    print("KERNEL_OK")
</pallas_src>

<mosaic_0001>
module attributes {stable_mosaic.version = 11 : i64} {
  func.func @fused_kernel(%arg0: memref<32x64xbf16, #tpu.memory_space<vmem>>, %arg1: memref<64x64xbf16, #tpu.memory_space<vmem>>, %arg2: memref<64x256xbf16, #tpu.memory_space<vmem>>, %arg3: memref<3x256xf32, #tpu.memory_space<vmem>>, %arg4: memref<2x256xf32, #tpu.memory_space<vmem>>, %arg5: memref<32x64xf32, #tpu.memory_space<vmem>>) attributes {dimension_semantics = [], scalar_prefetch = 0 : i64, scratch_operands = 0 : i64, tpu.core_type = #tpu.core_type<tc>} {
    %c0 = arith.constant 0 : index
    %c0_0 = arith.constant 0 : index
    %0 = vector.load %arg3[%c0, %c0_0] : memref<3x256xf32, #tpu.memory_space<vmem>>, vector<1x64xf32>
    %c1 = arith.constant 1 : index
    %c0_1 = arith.constant 0 : index
    %1 = vector.load %arg3[%c1, %c0_1] : memref<3x256xf32, #tpu.memory_space<vmem>>, vector<1x64xf32>
    %c2 = arith.constant 2 : index
    %c0_2 = arith.constant 0 : index
    %2 = vector.load %arg3[%c2, %c0_2] : memref<3x256xf32, #tpu.memory_space<vmem>>, vector<1x256xf32>
    %c0_3 = arith.constant 0 : index
    %c0_4 = arith.constant 0 : index
    %3 = vector.load %arg0[%c0_3, %c0_4] : memref<32x64xbf16, #tpu.memory_space<vmem>>, vector<32x64xbf16>
    %c0_5 = arith.constant 0 : index
    %c0_6 = arith.constant 0 : index
    %4 = vector.load %arg1[%c0_5, %c0_6] : memref<64x64xbf16, #tpu.memory_space<vmem>>, vector<64x64xbf16>
    %cst = arith.constant dense<0.000000e+00> : vector<32x64xf32>
    %5 = tpu.matmul %3, %4, %cst {dimension_numbers = #tpu.dot_dimension_numbers<[1], [0], [0], [1], [0, 0, 1, 1], [], []>} : vector<32x64xbf16>, vector<64x64xbf16>, vector<32x64xf32> -> vector<32x64xf32>
    %c0_7 = arith.constant 0 : index
    %c0_8 = arith.constant 0 : index
    %6 = vector.load %arg5[%c0_7, %c0_8] : memref<32x64xf32, #tpu.memory_space<vmem>>, vector<32x64xf32>
    tpu.vector_store %arg5[%c0_7, %c0_8], %5 {strides = array<i32>} : memref<32x64xf32, #tpu.memory_space<vmem>>, vector<32x64xf32>,
    %cst_9 = arith.constant dense<0.000000e+00> : vector<32xf32>
    %7 = vector.multi_reduction <add>, %5, %cst_9 [1] : vector<32x64xf32> to vector<32xf32>
    %8 = vector.shape_cast %7 : vector<32xf32> to vector<32x1xf32>
    %cst_10 = arith.constant 6.400000e+01 : f32
    %9 = vector.broadcast %cst_10 : f32 to vector<32x1xf32>
    %10 = arith.divf %8, %9 : vector<32x1xf32>
    %11 = vector.broadcast %10 : vector<32x1xf32> to vector<32x64xf32>
    %12 = arith.subf %5, %11 : vector<32x64xf32>
    %13 = vector.broadcast %10 : vector<32x1xf32> to vector<32x64xf32>
    %14 = arith.subf %5, %13 : vector<32x64xf32>
    %15 = arith.mulf %12, %14 : vector<32x64xf32>
    %cst_11 = arith.constant dense<0.000000e+00> : vector<32xf32>
    %16 = vector.multi_reduction <add>, %15, %cst_11 [1] : vector<32x64xf32> to vector<32xf32>
    %17 = vector.shape_cast %16 : vector<32xf32> to vector<32x1xf32>
    %cst_12 = arith.constant 6.400000e+01 : f32
    %18 = vector.broadcast %cst_12 : f32 to vector<32x1xf32>
    %19 = arith.divf %17, %18 : vector<32x1xf32>
    %20 = vector.broadcast %10 : vector<32x1xf32> to vector<32x64xf32>
    %21 = arith.subf %5, %20 : vector<32x64xf32>
    %cst_13 = arith.constant 9.99999974E-6 : f32
    %22 = vector.broadcast %cst_13 : f32 to vector<32x1xf32>
    %23 = arith.addf %19, %22 : vector<32x1xf32>
    %24 = math.rsqrt %23 : vector<32x1xf32>
    %25 = vector.broadcast %24 : vector<32x1xf32> to vector<32x64xf32>
    %26 = arith.mulf %21, %25 : vector<32x64xf32>
    %27 = vector.broadcast %0 : vector<1x64xf32> to vector<32x64xf32>
    %28 = arith.mulf %26, %27 : vector<32x64xf32>
    %29 = vector.broadcast %1 : vector<1x64xf32> to vector<32x64xf32>
    %30 = arith.addf %28, %29 : vector<32x64xf32>
    %31 = arith.truncf %30 : vector<32x64xf32> to vector<32x64xbf16>
    %c0_14 = arith.constant 0 : index
    %c0_15 = arith.constant 0 : index
    %32 = vector.load %arg2[%c0_14, %c0_15] : memref<64x256xbf16, #tpu.memory_space<vmem>>, vector<64x256xbf16>
    %cst_16 = arith.constant dense<0.000000e+00> : vector<32x256xf32>
    %33 = tpu.matmul %31, %32, %cst_16 {dimension_numbers = #tpu.dot_dimension_numbers<[1], [0], [0], [1], [0, 0, 1, 1], [], []>} : vector<32x64xbf16>, vector<64x256xbf16>, vector<32x256xf32> -> vector<32x256xf32>
    %34 = vector.extract_strided_slice %33 {offsets = [0, 0], sizes = [16, 256], strides = [1, 1]} : vector<32x256xf32> to vector<16x256xf32>
    %cst_17 = arith.constant dense<0.000000e+00> : vector<256xf32>
    %35 = vector.multi_reduction <add>, %34, %cst_17 [0] : vector<16x256xf32> to vector<256xf32>
    %36 = vector.shape_cast %35 : vector<256xf32> to vector<1x256xf32>
    %cst_18 = arith.constant 1.600000e+01 : f32
    %37 = vector.broadcast %cst_18 : f32 to vector<1x256xf32>
    %38 = arith.divf %36, %37 : vector<1x256xf32>
    %39 = vector.extract_strided_slice %33 {offsets = [16, 0], sizes = [16, 256], strides = [1, 1]} : vector<32x256xf32> to vector<16x256xf32>
    %cst_19 = arith.constant dense<0.000000e+00> : vector<256xf32>
    %40 = vector.multi_reduction <add>, %39, %cst_19 [0] : vector<16x256xf32> to vector<256xf32>
    %41 = vector.shape_cast %40 : vector<256xf32> to vector<1x256xf32>
    %cst_20 = arith.constant 1.600000e+01 : f32
    %42 = vector.broadcast %cst_20 : f32 to vector<1x256xf32>
    %43 = arith.divf %41, %42 : vector<1x256xf32>
    %44 = tpu.concatenate %38, %43 in 0 : vector<1x256xf32>, vector<1x256xf32> -> vector<2x256xf32>
    %45 = vector.broadcast %2 : vector<1x256xf32> to vector<2x256xf32>
    %46 = arith.addf %44, %45 : vector<2x256xf32>
    %c0_21 = arith.constant 0 : index
    %c0_22 = arith.constant 0 : index
    %47 = vector.load %arg4[%c0_21, %c0_22] : memref<2x256xf32, #tpu.memory_space<vmem>>, vector<2x256xf32>
    tpu.vector_store %arg4[%c0_21, %c0_22], %46 {strides = array<i32>} : memref<2x256xf32, #tpu.memory_space<vmem>>, vector<2x256xf32>,
    return
  }
}

</mosaic_0001>

<llo_original>
// kernel: triplet_model_forward.3
$region0: #{triplet_model_forward.3}
  #allocation0 [shape = 'u32[]', space=smem, size = 0x4, offset = 0x4, fixed_abs, tag = 'smem constant byte address 0x4 - core index']
  #allocation1 [shape = 'u32[144,128]{1,0:T(1,128)}', space=vmem, size = 0x12000, scoped, tag = 'internal scratch']
  %s0 = inlined_call_operand.vmem [shape: bf16[32,64], index: 0, kind: input, shape index: {}]
  %s1 = inlined_call_operand.vmem [shape: bf16[64,64], index: 1, kind: input, shape index: {}]
  %s2 = inlined_call_operand.vmem [shape: bf16[64,256], index: 2, kind: input, shape index: {}]
  %s3 = inlined_call_operand.vmem [shape: f32[3,256], index: 3, kind: input, shape index: {}]
  %s4 = inlined_call_operand.hbm [shape: f32[2,256], index: 4, kind: output, shape index: {0}]
  %s5 = inlined_call_operand.vmem [shape: f32[32,64], index: 5, kind: output, shape index: {1}]
  %6 = xla_tuple %s4, %s5
  %s7 = sld [smem:[#allocation0]]
  $region34: #{triplet_model_forward.3} parent=0
    _
  %s9 = ssub.s32 1, %s7
  %s10 = scalar_select 0, %s9, %s7
  $region1: #{triplet_model_forward.3} parent=0
    #allocation2 [shape = 'u8[2048]{0}', space=vmem, size = 0x800, scoped, tag = 'output window, operand 0, single buffered']
    #allocation3 [shape = 's32[1]{0}', space=sflag, size = 0x4, scoped, tag = 'scoped memory for triplet_model_forward.3']
    %11 = vsyncpa [#allocation3], 0
    // Predicated region
    $region2: #{triplet_model_forward.3} parent=1 // pred_check
      _
    $region3: #{triplet_model_forward.3} parent=1 // pred_check_branch
      %13 = sbr.rel (0) target = $region5
    $region4: #{triplet_model_forward.3} parent=1 // pred_region
      _
    $region5: #{triplet_model_forward.3} parent=1 // pred_fallthru
      _
    // Predicated region
    $region6: #{triplet_model_forward.3} parent=1 // pred_check
      _
    $region7: #{triplet_model_forward.3} parent=1 // pred_check_branch
      %15 = sbr.rel (0) target = $region9
    $region8: #{triplet_model_forward.3} parent=1 // pred_region
      _
    $region9: #{triplet_model_forward.3} parent=1 // pred_fallthru
      _
    // Predicated region
    $region10: #{triplet_model_forward.3} parent=1 // pred_check
      _
    $region11: #{triplet_model_forward.3} parent=1 // pred_check_branch
      %17 = sbr.rel (0) target = $region13
    $region12: #{triplet_model_forward.3} parent=1 // pred_region
      _
    $region13: #{triplet_model_forward.3} parent=1 // pred_fallthru
      _
    // Predicated region
    $region14: #{triplet_model_forward.3} parent=1 // pred_check
      _
    $region15: #{triplet_model_forward.3} parent=1 // pred_check_branch
      %19 = sbr.rel (0) target = $region17
    $region16: #{triplet_model_forward.3} parent=1 // pred_region
      _
    $region17: #{triplet_model_forward.3} parent=1 // pred_fallthru
      _
    %v21 = vld [vmem:[%s3] sm:$0x1]
    %v22 = vld [vmem:[%s3 + $0x1] sm:$0x1]
    %s23 = scalar_lea.vmem %s3, 2
    %v24 = vld [vmem:[%s23] ss:$4 sm:$0x3]
    %v25 = vld [vmem:[%s0] sm:$0xf]
    %v26 = vld [vmem:[%s0 + $0x4] sm:$0xf]
    %v27 = vld [vmem:[%s0 + $0x8] sm:$0xf]
    %v28 = vld [vmem:[%s0 + $0xc] sm:$0xf]
    %v29 = vld [vmem:[%s1] sm:$0xf]
    %v30 = vld [vmem:[%s1 + $0x4] sm:$0xf]
    %v31 = vld [vmem:[%s1 + $0x8] sm:$0xf]
    %v32 = vld [vmem:[%s1 + $0xc] sm:$0xf]
    %v33 = vld [vmem:[%s1 + $0x10] sm:$0xf]
    %v34 = vld [vmem:[%s1 + $0x14] sm:$0xf]
    %v35 = vld [vmem:[%s1 + $0x18] sm:$0xf]
    %v36 = vld [vmem:[%s1 + $0x1c] sm:$0xf]
    %v41 = vunpack.c.l.b16 %v25
    %v42 = vunpack.c.l.b16 %v26
    %v43 = vunpack.c.l.b16 %v27
    %v44 = vunpack.c.l.b16 %v28
    %v45 = vpack.c.b16 %v42, %v41
    %v46 = vpack.c.b16 %v44, %v43
    %v55 = vunpack.c.l.b16 %v29
    %v56 = vunpack.c.l.b16 %v30
    %v57 = vunpack.c.l.b16 %v31
    %v58 = vunpack.c.l.b16 %v32
    %v59 = vunpack.c.l.b16 %v33
    %v60 = vunpack.c.l.b16 %v34
    %v61 = vunpack.c.l.b16 %v35
    %v62 = vunpack.c.l.b16 %v36
    %v63 = vpack.c.b16 %v56, %v55
    %v64 = vpack.c.b16 %v58, %v57
    %v65 = vpack.c.b16 %v60, %v59
    %v66 = vpack.c.b16 %v62, %v61
    %vm71 = vcmask 523264
    %v73 = vsel %vm71, %v45, 0
    %v76 = vsel %vm71, %v46, 0
    %78 = vmatprep.subr.bf16.mxu0 0
    %79 = vmatpush1.bf16.msra.mxu0 0
    %80 = vmatprep.subr.bf16.mxu0 0
    %81 = vmatpush1.bf16.msra.mxu0 0
    %82 = vmatprep.subr.bf16.mxu0 0
    %83 = vmatpush1.bf16.msra.mxu0 0
    %84 = vmatprep.subr.bf16.mxu0 0
    %85 = vmatpush1.bf16.msra.mxu0 0
    %86 = vmatprep.subr.bf16.mxu0 0
    %87 = vmatpush1.bf16.msra.mxu0 %v66
    %88 = vmatprep.subr.bf16.mxu0 0
    %89 = vmatpush1.bf16.msra.mxu0 %v65
    %90 = vmatprep.subr.bf16.mxu0 0
    %91 = vmatpush1.bf16.msra.mxu0 %v64
    %92 = vmatprep.subr.bf16.mxu0 0
    %93 = vmatpush1.bf16.msra.mxu0 %v63
    %94 = vmatprep.subr.bf16.mxu0 0
    %95 = vmatpush2.bf16.msra.mxu0 0
    %96 = vmatprep.subr.bf16.mxu0 0
    %97 = vmatpush2.bf16.msra.mxu0 0
    %98 = vmatprep.subr.bf16.mxu0 0
    %99 = vmatpush2.bf16.msra.mxu0 0
    %100 = vmatprep.subr.bf16.mxu0 0
    %101 = vmatpush2.bf16.msra.mxu0 0
    %102 = vmatprep.subr.bf16.mxu0 0
    %103 = vmatpush2.bf16.msra.mxu0 0
    %104 = vmatprep.subr.bf16.mxu0 0
    %105 = vmatpush2.bf16.msra.mxu0 0
    %106 = vmatprep.subr.bf16.mxu0 0
    %107 = vmatpush2.bf16.msra.mxu0 0
    %108 = vmatprep.subr.bf16.mxu0 0
    %109 = vmatpush2.bf16.msra.mxu0 0
    %110 = vmatprep.mubr.bf16.mxu0 0
    %111 = vmatmul.mubr.bf16.gmra.mxu0 %v73
    %v112 = vpop.f32.mrf.mxu0
    %v113 = vadd.f32 0.0, %v112
    %v114 = vpop.f32.mrf.mxu0
    %v115 = vpop.f32.mrf.mxu0
    %v116 = vadd.f32 0.0, %v115
    %v117 = vpop.f32.mrf.mxu0
    %118 = vmatprep.mubr.bf16.mxu0 0
    %119 = vmatmul.mubr.bf16.gmra.mxu0 %v76
    %v120 = vpop.f32.mrf.mxu0
    %v121 = vadd.f32 0.0, %v120
    %v122 = vpop.f32.mrf.mxu0
    %v123 = vpop.f32.mrf.mxu0
    %v124 = vadd.f32 0.0, %v123
    %v125 = vpop.f32.mrf.mxu0
    %126 = vdwg.mxu0
    %127 = vst.msk [vmem:[%s5] sm:$0xff] %vm71, %v113
    %128 = vst.msk [vmem:[%s5 + $0x8] sm:$0xff] %vm71, %v116
    %129 = vst.msk [vmem:[%s5 + $0x10] sm:$0xff] %vm71, %v121
    %130 = vst.msk [vmem:[%s5 + $0x18] sm:$0xff] %vm71, %v124
    %v131 = vsel %vm71, %v113, 0.0
    %132 = vadd.xlane.f32.xlu0 %v131
    %v133 = vpop.xlane.xlu0 %132
    %v134 = vsel %vm71, %v116, 0.0
    %135 = vadd.xlane.f32.xlu0 %v134
    %v136 = vpop.xlane.xlu0 %135
    %v137 = vsel %vm71, %v121, 0.0
    %138 = vadd.xlane.f32.xlu0 %v137
    %v139 = vpop.xlane.xlu0 %138
    %v140 = vsel %vm71, %v124, 0.0
    %141 = vadd.xlane.f32.xlu0 %v140
    %v142 = vpop.xlane.xlu0 %141
    %v143 = vrcp.pop 64.0
    %v144 = vmul.f32 %v133, %v143
    %v145 = vmul.f32 %v136, %v143
    %v146 = vmul.f32 %v139, %v143
    %v147 = vmul.f32 %v142, %v143
    %v148 = vsub.f32 %v113, %v144
    %v149 = vsub.f32 %v116, %v145
    %v150 = vsub.f32 %v121, %v146
    %v151 = vsub.f32 %v124, %v147
    %v152 = vmul.f32 %v148, %v148
    %v153 = vmul.f32 %v149, %v149
    %v154 = vmul.f32 %v150, %v150
    %v155 = vmul.f32 %v151, %v151
    %v156 = vsel %vm71, %v152, 0.0
    %157 = vadd.xlane.f32.xlu0 %v156
    %v158 = vpop.xlane.xlu0 %157
    %v159 = vsel %vm71, %v153, 0.0
    %160 = vadd.xlane.f32.xlu0 %v159
    %v161 = vpop.xlane.xlu0 %160
    %v162 = vsel %vm71, %v154, 0.0
    %163 = vadd.xlane.f32.xlu0 %v162
    %v164 = vpop.xlane.xlu0 %163
    %v165 = vsel %vm71, %v155, 0.0
    %166 = vadd.xlane.f32.xlu0 %v165
    %v167 = vpop.xlane.xlu0 %166
    %v168 = vmul.f32 %v158, %v143
    %v169 = vmul.f32 %v161, %v143
    %v170 = vmul.f32 %v164, %v143
    %v171 = vmul.f32 %v167, %v143
    %v172 = vadd.f32 %v168, 1e-05
    %v173 = vadd.f32 %v169, 1e-05
    %v174 = vadd.f32 %v170, 1e-05
    %v175 = vadd.f32 %v171, 1e-05
    %v176 = vrsqrt.pop %v172
    %v177 = vrsqrt.pop %v173
    %v178 = vrsqrt.pop %v174
    %v179 = vrsqrt.pop %v175
    %v180 = vmul.f32 %v148, %v176
    %v181 = vmul.f32 %v149, %v177
    %v182 = vmul.f32 %v150, %v178
    %v183 = vmul.f32 %v151, %v179
    %v184 = vlaneseq
    %v185 = vshrl.u32 %v184, 7
    %v186 = vsub.s32 0, %v185
    %v187 = vrot.slane %v21, %v186
    %v188 = vmul.f32 %v180, %v187
    %v189 = vmul.f32 %v181, %v187
    %v190 = vmul.f32 %v182, %v187
    %v191 = vmul.f32 %v183, %v187
    %v192 = vlaneseq
    %v193 = vshrl.u32 %v192, 7
    %v194 = vsub.s32 0, %v193
    %v195 = vrot.slane %v22, %v194
    %v196 = vadd.f32 %v188, %v195
    %v197 = vadd.f32 %v189, %v195
    %v198 = vadd.f32 %v190, %v195
    %v199 = vadd.f32 %v191, %v195
    %v200 = vpack.c.bf16 %v197, %v196
    %v201 = vpack.c.bf16 %v199, %v198
    %v202 = vld [vmem:[%s2] sm:$0xff]
    %v203 = vld [vmem:[%s2 + $0x8] sm:$0xff]
    %v204 = vld [vmem:[%s2 + $0x10] sm:$0xff]
    %v205 = vld [vmem:[%s2 + $0x18] sm:$0xff]
    %v206 = vld [vmem:[%s2 + $0x20] sm:$0xff]
    %v207 = vld [vmem:[%s2 + $0x28] sm:$0xff]
    %v208 = vld [vmem:[%s2 + $0x30] sm:$0xff]
    %v209 = vld [vmem:[%s2 + $0x38] sm:$0xff]
    %v218 = vunpack.c.l.b16 %v202
    %v219 = vunpack.c.h.b16 %v202
    %v220 = vunpack.c.l.b16 %v203
    %v221 = vunpack.c.h.b16 %v203
    %v222 = vunpack.c.l.b16 %v204
    %v223 = vunpack.c.h.b16 %v204
    %v224 = vunpack.c.l.b16 %v205
    %v225 = vunpack.c.h.b16 %v205
    %v226 = vunpack.c.l.b16 %v206
    %v227 = vunpack.c.h.b16 %v206
    %v228 = vunpack.c.l.b16 %v207
    %v229 = vunpack.c.h.b16 %v207
    %v230 = vunpack.c.l.b16 %v208
    %v231 = vunpack.c.h.b16 %v208
    %v232 = vunpack.c.l.b16 %v209
    %v233 = vunpack.c.h.b16 %v209
    %v234 = vpack.c.b16 %v220, %v218
    %v235 = vpack.c.b16 %v221, %v219
    %v236 = vpack.c.b16 %v224, %v222
    %v237 = vpack.c.b16 %v225, %v223
    %v238 = vpack.c.b16 %v228, %v226
    %v239 = vpack.c.b16 %v229, %v227
    %v240 = vpack.c.b16 %v232, %v230
    %v241 = vpack.c.b16 %v233, %v231
    %v251 = vsel %vm71, %v200, 0
    %v254 = vsel %vm71, %v201, 0
    %256 = vmatprep.subr.bf16.mxu0 0
    %257 = vmatpush1.bf16.msra.mxu0 0
    %258 = vmatprep.subr.bf16.mxu0 0
    %259 = vmatpush1.bf16.msra.mxu0 0
    %260 = vmatprep.subr.bf16.mxu0 0
    %261 = vmatpush1.bf16.msra.mxu0 0
    %262 = vmatprep.subr.bf16.mxu0 0
    %263 = vmatpush1.bf16.msra.mxu0 0
    %264 = vmatprep.subr.bf16.mxu0 %v241
    %265 = vmatpush1.bf16.msra.mxu0 %v240
    %266 = vmatprep.subr.bf16.mxu0 %v239
    %267 = vmatpush1.bf16.msra.mxu0 %v238
    %268 = vmatprep.subr.bf16.mxu0 %v237
    %269 = vmatpush1.bf16.msra.mxu0 %v236
    %270 = vmatprep.subr.bf16.mxu0 %v235
    %271 = vmatpush1.bf16.msra.mxu0 %v234
    %272 = vmatprep.subr.bf16.mxu0 0
    %273 = vmatpush2.bf16.msra.mxu0 0
    %274 = vmatprep.subr.bf16.mxu0 0
    %275 = vmatpush2.bf16.msra.mxu0 0
    %276 = vmatprep.subr.bf16.mxu0 0
    %277 = vmatpush2.bf16.msra.mxu0 0
    %278 = vmatprep.subr.bf16.mxu0 0
    %279 = vmatpush2.bf16.msra.mxu0 0
    %280 = vmatprep.subr.bf16.mxu0 0
    %281 = vmatpush2.bf16.msra.mxu0 0
    %282 = vmatprep.subr.bf16.mxu0 0
    %283 = vmatpush2.bf16.msra.mxu0 0
    %284 = vmatprep.subr.bf16.mxu0 0
    %285 = vmatpush2.bf16.msra.mxu0 0
    %286 = vmatprep.subr.bf16.mxu0 0
    %287 = vmatpush2.bf16.msra.mxu0 0
    %288 = vmatprep.mubr.bf16.mxu0 0
    %289 = vmatmul.mubr.bf16.gmra.mxu0 %v251
    %v290 = vpop.f32.mrf.mxu0
    %v291 = vadd.f32 0.0, %v290
    %v292 = vpop.f32.mrf.mxu0
    %v293 = vadd.f32 0.0, %v292
    %v294 = vpop.f32.mrf.mxu0
    %v295 = vadd.f32 0.0, %v294
    %v296 = vpop.f32.mrf.mxu0
    %v297 = vadd.f32 0.0, %v296
    %298 = vmatprep.mubr.bf16.mxu0 0
    %299 = vmatmul.mubr.bf16.gmra.mxu0 %v254
    %v300 = vpop.f32.mrf.mxu0
    %v301 = vadd.f32 0.0, %v300
    %v302 = vpop.f32.mrf.mxu0
    %v303 = vadd.f32 0.0, %v302
    %v304 = vpop.f32.mrf.mxu0
    %v305 = vadd.f32 0.0, %v304
    %v306 = vpop.f32.mrf.mxu0
    %v307 = vadd.f32 0.0, %v306
    %308 = vdwg.mxu0
    %v309 = vadd.f32 %v291, %v295
    %v310 = vrot.slane %v309, 4
    %v311 = vadd.f32 %v309, %v310
    %v312 = vrot.slane %v311, 2
    %v313 = vadd.f32 %v311, %v312
    %v314 = vrot.slane %v313, 1
    %v315 = vadd.f32 %v313, %v314
    %v316 = vadd.f32 %v293, %v297
    %v317 = vrot.slane %v316, 4
    %v318 = vadd.f32 %v316, %v317
    %v319 = vrot.slane %v318, 2
    %v320 = vadd.f32 %v318, %v319
    %v321 = vrot.slane %v320, 1
    %v322 = vadd.f32 %v320, %v321
    %v323 = vrcp.pop 16.0
    %v324 = vmul.f32 %v315, %v323
    %v325 = vmul.f32 %v322, %v323
    %v326 = vadd.f32 %v301, %v305
    %v327 = vrot.slane %v326, 4
    %v328 = vadd.f32 %v326, %v327
    %v329 = vrot.slane %v328, 2
    %v330 = vadd.f32 %v328, %v329
    %v331 = vrot.slane %v330, 1
    %v332 = vadd.f32 %v330, %v331
    %v333 = vadd.f32 %v303, %v307
    %v334 = vrot.slane %v333, 4
    %v335 = vadd.f32 %v333, %v334
    %v336 = vrot.slane %v335, 2
    %v337 = vadd.f32 %v335, %v336
    %v338 = vrot.slane %v337, 1
    %v339 = vadd.f32 %v337, %v338
    %v340 = vmul.f32 %v332, %v323
    %v341 = vmul.f32 %v339, %v323
    %vm342 = vcmask 1040384
    %v343 = vsel %vm342, %v324, %v340
    %v344 = vsel %vm342, %v325, %v341
    %v346 = vlaneseq
    %v347 = vshrl.u32 %v346, 7
    %v348 = vsub.s32 0, %v347
    %v349 = vrot.slane %v24, %v348
    %v350 = vlaneseq
    %v351 = vshrl.u32 %v350, 7
    %v352 = vsub.s32 1, %v351
    %v353 = vrot.slane %v24, %v352
    %v356 = vadd.f32 %v343, %v349
    %v357 = vadd.f32 %v344, %v353
    %v360 = vcombine.low %v356, %v357
    %v362 = vunpack.c.l.s4 1983009808
    %v363 = vunpack.c.0.s8 %v362
    %v364 = vlaneseq
    %v365 = vshrl.u32 %v364, 7
    %v366 = vsub.s32 %v363, %v365
    %v367 = vrot.slane %v360, %v366
    %369 = vst [vmem:[#allocation2] sm:$0xf] %v367
    // Predicated region
    $region18: #{triplet_model_forward.3} parent=1 // pred_check
      _
    $region19: #{triplet_model_forward.3} parent=1 // pred_check_branch
      %371 = sbr.rel (0) target = $region21
    $region20: #{triplet_model_forward.3} parent=1 // pred_region
      %s373 = ssub.s32 64, 64
      %374 = vsyncadd [#allocation3], %s373
      %s376 = sshll.u32 [#allocation2], 4
      %s377 = int_to_ptr.vmem [resolvable:$true] %s376
      %379 = dma.vmem_to_hbm [thread:$0]  %s377, 64, %s4, [#allocation3]
    $region21: #{triplet_model_forward.3} parent=1 // pred_fallthru
      _
    // Predicated region
    $region22: #{triplet_model_forward.3} parent=1 // pred_check
      _
    $region23: #{triplet_model_forward.3} parent=1 // pred_check_branch
      %381 = sbr.rel (0) target = $region25
    $region24: #{triplet_model_forward.3} parent=1 // pred_region
      _
    $region25: #{triplet_model_forward.3} parent=1 // pred_fallthru
      _
    // Predicated region
    $region26: #{triplet_model_forward.3} parent=1 // pred_check
      _
    $region27: #{triplet_model_forward.3} parent=1 // pred_check_branch
      %383 = sbr.rel (0) target = $region29
    $region28: #{triplet_model_forward.3} parent=1 // pred_region
      %384 = dma.done [#allocation3], 64
    $region29: #{triplet_model_forward.3} parent=1 // pred_fallthru
      _
    // Predicated region
    $region30: #{triplet_model_forward.3} parent=1 // pred_check
      _
    $region31: #{triplet_model_forward.3} parent=1 // pred_check_branch
      %386 = sbr.rel (0) target = $region33
    $region32: #{triplet_model_forward.3} parent=1 // pred_region
      _
    $region33: #{triplet_model_forward.3} parent=1 // pred_fallthru
      _
    %387 = vsyncpa [#allocation3], 1

</llo_original>
